<compile_context>
chip_gen: v7x
topology: tpu7x:2x2x1
jax: 0.10.0
libtpu: 0.0.40
codegen_flags: <defaults>
</compile_context>

<pallas_src>
import functools

import jax
import jax.numpy as jnp
from jax.experimental import pallas as pl
from jax.experimental.pallas import tpu as pltpu


def _group_norm_kernel(x_ref, gamma_ref, beta_ref, o_ref, *, eps, cg, hw):
    # x_ref:               (N*G, Cg*HW)  -- one row per (batch, group)
    # gamma_ref/beta_ref:  (N*G, Cg)     -- per-row, per-channel affine params
    x = x_ref[...].astype(jnp.float32)

    inv_n = 1.0 / float(cg * hw)
    mean = jnp.sum(x, axis=-1, keepdims=True) * inv_n          # (N*G, 1)
    xc = x - mean                                              # centered once, reused
    var = jnp.sum(xc * xc, axis=-1, keepdims=True) * inv_n     # biased variance
    rstd = jax.lax.rsqrt(var + eps)                            # (N*G, 1), EUP

    gamma = gamma_ref[...].astype(jnp.float32)                 # (N*G, Cg)
    beta = beta_ref[...].astype(jnp.float32)
    scale = gamma * rstd                                       # (N*G, Cg)

    # Per-channel affine folded into normalization:
    #   out = (x - mean) * rstd * gamma_c + beta_c = xc * scale_c + beta_c
    # Each channel is a contiguous, lane-aligned column block of width HW
    # (multiple of 128) -> unmasked lane-dense stores.  Static unrolled loop.
    for c in range(cg):
        sl = slice(c * hw, (c + 1) * hw)
        o_ref[:, sl] = (
            xc[:, sl] * scale[:, c:c + 1] + beta[:, c:c + 1]
        ).astype(o_ref.dtype)


def group_norm_pallas(x, gamma, beta, *, num_groups, eps=1e-5):
    """GroupNorm over NCHW input x with per-channel affine gamma/beta."""
    N, C, H, W = x.shape
    assert C % num_groups == 0
    G = num_groups
    Cg = C // G
    HW = H * W
    NG = N * G
    CgHW = Cg * HW

    # Glue reshapes (plain JAX; NCHW grouping is already contiguous).
    x_r = x.reshape(NG, CgHW)
    # Row n*G + g gets gamma/beta for channels [g*Cg : (g+1)*Cg].
    gamma_rows = jnp.tile(gamma.reshape(G, Cg), (N, 1))   # (N*G, Cg)
    beta_rows = jnp.tile(beta.reshape(G, Cg), (N, 1))     # (N*G, Cg)

    kernel = functools.partial(_group_norm_kernel, eps=eps, cg=Cg, hw=HW)

    out = pl.pallas_call(
        kernel,
        out_shape=jax.ShapeDtypeStruct((NG, CgHW), x.dtype),
        grid=(1,),  # single step: whole tensor resident in VMEM
        in_specs=[
            pl.BlockSpec((NG, CgHW), lambda i: (0, 0)),
            pl.BlockSpec((NG, Cg), lambda i: (0, 0)),
            pl.BlockSpec((NG, Cg), lambda i: (0, 0)),
        ],
        out_specs=pl.BlockSpec((NG, CgHW), lambda i: (0, 0)),
        compiler_params=pltpu.CompilerParams(
            dimension_semantics=("arbitrary",)
        ),
    )(x_r, gamma_rows, beta_rows)

    return out.reshape(N, C, H, W)


def group_norm_ref(x, gamma, beta, *, num_groups, eps=1e-5):
    """Pure-JAX reference matching torch.nn.GroupNorm semantics."""
    N, C, H, W = x.shape
    G = num_groups
    xr = x.reshape(N, G, -1).astype(jnp.float32)
    mean = jnp.mean(xr, axis=-1, keepdims=True)
    var = jnp.mean(jnp.square(xr - mean), axis=-1, keepdims=True)
    xn = ((xr - mean) * jax.lax.rsqrt(var + eps)).reshape(N, C, H, W)
    return (xn * gamma.reshape(1, C, 1, 1) + beta.reshape(1, C, 1, 1)).astype(x.dtype)


if __name__ == "__main__":
    # _TestModel(num_groups=2, num_channels=4)
    N, C, H, W = 2, 4, 16, 16
    num_groups = 2
    eps = 1e-5

    key = jax.random.PRNGKey(0)
    x = jax.random.normal(key, (N, C, H, W), dtype=jnp.float32)

    # Deterministic non-trivial affine params (exercise the affine path).
    gamma = 1.0 + 0.1 * jnp.arange(C, dtype=jnp.float32)
    beta = 0.05 * jnp.arange(C, dtype=jnp.float32)

    y = group_norm_pallas(x, gamma, beta, num_groups=num_groups, eps=eps)
    y = jax.block_until_ready(y)

    y_ref = group_norm_ref(x, gamma, beta, num_groups=num_groups, eps=eps)
    assert jnp.allclose(y, y_ref, atol=1e-5, rtol=1e-5), "mismatch vs reference"

    print("KERNEL_OK")
</pallas_src>

<mosaic_0001>
module attributes {stable_mosaic.version = 11 : i64} {
  func.func @_group_norm_kernel(%arg0: i32, %arg1: memref<4x512xf32, #tpu.memory_space<vmem>>, %arg2: memref<4x2xf32, #tpu.memory_space<vmem>>, %arg3: memref<4x2xf32, #tpu.memory_space<vmem>>, %arg4: memref<4x512xf32, #tpu.memory_space<vmem>>) attributes {dimension_semantics = [#tpu.dimension_semantics<arbitrary>], iteration_bounds = array<i64: 1>, scalar_prefetch = 0 : i64, scratch_operands = 0 : i64, tpu.core_type = #tpu.core_type<tc>, window_params = [{pipeline_mode = #tpu.pipeline_mode<synchronous>, transform_indices = @transform_0, window_bounds = array<i64: 4, 512>}, {pipeline_mode = #tpu.pipeline_mode<synchronous>, transform_indices = @transform_1, window_bounds = array<i64: 4, 2>}, {pipeline_mode = #tpu.pipeline_mode<synchronous>, transform_indices = @transform_2, window_bounds = array<i64: 4, 2>}, {pipeline_mode = #tpu.pipeline_mode<synchronous>, transform_indices = @transform_3, window_bounds = array<i64: 4, 512>}]} {
    %c0 = arith.constant 0 : index
    %c0_0 = arith.constant 0 : index
    %0 = vector.load %arg1[%c0, %c0_0] : memref<4x512xf32, #tpu.memory_space<vmem>>, vector<4x512xf32>
    %cst = arith.constant dense<0.000000e+00> : vector<4xf32>
    %1 = vector.multi_reduction <add>, %0, %cst [1] : vector<4x512xf32> to vector<4xf32>
    %2 = vector.shape_cast %1 : vector<4xf32> to vector<4x1xf32>
    %cst_1 = arith.constant 0.001953125 : f32
    %3 = vector.broadcast %cst_1 : f32 to vector<4x1xf32>
    %4 = arith.mulf %2, %3 : vector<4x1xf32>
    %5 = vector.broadcast %4 : vector<4x1xf32> to vector<4x512xf32>
    %6 = arith.subf %0, %5 : vector<4x512xf32>
    %7 = arith.mulf %6, %6 : vector<4x512xf32>
    %cst_2 = arith.constant dense<0.000000e+00> : vector<4xf32>
    %8 = vector.multi_reduction <add>, %7, %cst_2 [1] : vector<4x512xf32> to vector<4xf32>
    %9 = vector.shape_cast %8 : vector<4xf32> to vector<4x1xf32>
    %cst_3 = arith.constant 0.001953125 : f32
    %10 = vector.broadcast %cst_3 : f32 to vector<4x1xf32>
    %11 = arith.mulf %9, %10 : vector<4x1xf32>
    %cst_4 = arith.constant 9.99999974E-6 : f32
    %12 = vector.broadcast %cst_4 : f32 to vector<4x1xf32>
    %13 = arith.addf %11, %12 : vector<4x1xf32>
    %14 = math.rsqrt %13 : vector<4x1xf32>
    %c0_5 = arith.constant 0 : index
    %c0_6 = arith.constant 0 : index
    %15 = vector.load %arg2[%c0_5, %c0_6] : memref<4x2xf32, #tpu.memory_space<vmem>>, vector<4x2xf32>
    %c0_7 = arith.constant 0 : index
    %c0_8 = arith.constant 0 : index
    %16 = vector.load %arg3[%c0_7, %c0_8] : memref<4x2xf32, #tpu.memory_space<vmem>>, vector<4x2xf32>
    %17 = vector.broadcast %14 : vector<4x1xf32> to vector<4x2xf32>
    %18 = arith.mulf %15, %17 : vector<4x2xf32>
    %19 = vector.extract_strided_slice %6 {offsets = [0, 0], sizes = [4, 256], strides = [1, 1]} : vector<4x512xf32> to vector<4x256xf32>
    %20 = vector.extract_strided_slice %18 {offsets = [0, 0], sizes = [4, 1], strides = [1, 1]} : vector<4x2xf32> to vector<4x1xf32>
    %21 = vector.broadcast %20 : vector<4x1xf32> to vector<4x256xf32>
    %22 = arith.mulf %19, %21 : vector<4x256xf32>
    %23 = vector.extract_strided_slice %16 {offsets = [0, 0], sizes = [4, 1], strides = [1, 1]} : vector<4x2xf32> to vector<4x1xf32>
    %24 = vector.broadcast %23 : vector<4x1xf32> to vector<4x256xf32>
    %25 = arith.addf %22, %24 : vector<4x256xf32>
    %c0_9 = arith.constant 0 : index
    %c0_10 = arith.constant 0 : index
    %26 = vector.load %arg4[%c0_9, %c0_10] : memref<4x512xf32, #tpu.memory_space<vmem>>, vector<4x256xf32>
    tpu.vector_store %arg4[%c0_9, %c0_10], %25 {strides = array<i32>} : memref<4x512xf32, #tpu.memory_space<vmem>>, vector<4x256xf32>,
    %27 = vector.extract_strided_slice %6 {offsets = [0, 256], sizes = [4, 256], strides = [1, 1]} : vector<4x512xf32> to vector<4x256xf32>
    %28 = vector.extract_strided_slice %18 {offsets = [0, 1], sizes = [4, 1], strides = [1, 1]} : vector<4x2xf32> to vector<4x1xf32>
    %29 = vector.broadcast %28 : vector<4x1xf32> to vector<4x256xf32>
    %30 = arith.mulf %27, %29 : vector<4x256xf32>
    %31 = vector.extract_strided_slice %16 {offsets = [0, 1], sizes = [4, 1], strides = [1, 1]} : vector<4x2xf32> to vector<4x1xf32>
    %32 = vector.broadcast %31 : vector<4x1xf32> to vector<4x256xf32>
    %33 = arith.addf %30, %32 : vector<4x256xf32>
    %c0_11 = arith.constant 0 : index
    %c256 = arith.constant 256 : index
    %34 = vector.load %arg4[%c0_11, %c256] : memref<4x512xf32, #tpu.memory_space<vmem>>, vector<4x256xf32>
    tpu.vector_store %arg4[%c0_11, %c256], %33 {strides = array<i32>} : memref<4x512xf32, #tpu.memory_space<vmem>>, vector<4x256xf32>,
    return
  }
  func.func @transform_0(%arg0: i32) -> (i32, i32) {
    %c0_i32 = arith.constant 0 : i32
    %c0_i32_0 = arith.constant 0 : i32
    %c0_i32_1 = arith.constant 0 : i32
    return %c0_i32, %c0_i32_0 : i32, i32
  }
  func.func @transform_1(%arg0: i32) -> (i32, i32) {
    %c0_i32 = arith.constant 0 : i32
    %c0_i32_0 = arith.constant 0 : i32
    %c0_i32_1 = arith.constant 0 : i32
    return %c0_i32, %c0_i32_0 : i32, i32
  }
  func.func @transform_2(%arg0: i32) -> (i32, i32) {
    %c0_i32 = arith.constant 0 : i32
    %c0_i32_0 = arith.constant 0 : i32
    %c0_i32_1 = arith.constant 0 : i32
    return %c0_i32, %c0_i32_0 : i32, i32
  }
  func.func @transform_3(%arg0: i32) -> (i32, i32) {
    %c0_i32 = arith.constant 0 : i32
    %c0_i32_0 = arith.constant 0 : i32
    %c0_i32_1 = arith.constant 0 : i32
    return %c0_i32, %c0_i32_0 : i32, i32
  }
}

</mosaic_0001>

<llo_original>
// kernel: tpu_custom_call.1
$region0: #{tpu_custom_call.1}
  #allocation0 [shape = 'u32[]', space=smem, size = 0x4, offset = 0x4, fixed_abs, tag = 'smem constant byte address 0x4 - core index']
  #allocation1 [shape = 'u32[144,128]{1,0:T(1,128)}', space=vmem, size = 0x12000, scoped, tag = 'internal scratch']
  %s0 = inlined_call_operand.hbm [shape: f32[4,512], index: 0, kind: input, shape index: {}]
  %s1 = inlined_call_operand.vmem [shape: f32[4,2], index: 1, kind: input, shape index: {}]
  %s2 = inlined_call_operand.vmem [shape: f32[4,2], index: 2, kind: input, shape index: {}]
  %s3 = inlined_call_operand.hbm [shape: f32[4,512], index: 3, kind: output, shape index: {}]
  %s4 = sld [smem:[#allocation0]]
  $region26: #{tpu_custom_call.1} parent=0
    _
  %s6 = ssub.s32 1, %s4
  %s7 = scalar_select 0, %s6, %s4
  $region1: #{tpu_custom_call.1} parent=0
    #allocation2 [shape = 'u8[8192]{0}', space=vmem, size = 0x2000, scoped, tag = 'input window, operand 0, single buffered']
    #allocation3 [shape = 's32[1]{0}', space=sflag, size = 0x4, scoped, tag = 'scoped memory for tpu_custom_call.1']
    #allocation4 [shape = 's32[1]{0}', space=sflag, size = 0x4, scoped, tag = 'scoped memory for tpu_custom_call.1']
    #allocation5 [shape = 'u8[8192]{0}', space=vmem, size = 0x2000, scoped, tag = 'output window, operand 0, single buffered']
    %8 = vsyncpa [#allocation3], 0
    %9 = vsyncpa [#allocation4], 0
    // Predicated region
    $region2: #{tpu_custom_call.1} parent=1 // pred_check
      _
    $region3: #{tpu_custom_call.1} parent=1 // pred_check_branch
      %11 = sbr.rel (0) target = $region5
    $region4: #{tpu_custom_call.1} parent=1 // pred_region
      %s13 = ssub.s32 256, 256
      %14 = vsyncadd [#allocation3], %s13
      %s16 = sshll.u32 [#allocation2], 4
      %s17 = int_to_ptr.vmem [resolvable:$true] %s16
      %19 = dma.hbm_to_vmem [thread:$0]  %s0, 256, %s17, [#allocation3]
    $region5: #{tpu_custom_call.1} parent=1 // pred_fallthru
      _
    // Predicated region
    $region6: #{tpu_custom_call.1} parent=1 // pred_check
      _
    $region7: #{tpu_custom_call.1} parent=1 // pred_check_branch
      %21 = sbr.rel (0) target = $region9
    $region8: #{tpu_custom_call.1} parent=1 // pred_region
      _
    $region9: #{tpu_custom_call.1} parent=1 // pred_fallthru
      _
    // Predicated region
    $region10: #{tpu_custom_call.1} parent=1 // pred_check
      _
    $region11: #{tpu_custom_call.1} parent=1 // pred_check_branch
      %23 = sbr.rel (0) target = $region13
    $region12: #{tpu_custom_call.1} parent=1 // pred_region
      _
    $region13: #{tpu_custom_call.1} parent=1 // pred_fallthru
      _
    // Predicated region
    $region14: #{tpu_custom_call.1} parent=1 // pred_check
      _
    $region15: #{tpu_custom_call.1} parent=1 // pred_check_branch
      %25 = sbr.rel (0) target = $region17
    $region16: #{tpu_custom_call.1} parent=1 // pred_region
      %26 = dma.done [#allocation3], 256
    $region17: #{tpu_custom_call.1} parent=1 // pred_fallthru
      _
    %v27 = vld [vmem:[#allocation2] sm:$0xff]
    %v28 = vld [vmem:[#allocation2 + $0x8] sm:$0xff]
    %v31 = vcombine.high %v27, %v27
    %v32 = vcombine.high %v28, %v28
    %vm35 = vcmask 1043456
    %v36 = vsel %vm35, %v27, 0.0
    %v37 = vsel %vm35, %v31, 0.0
    %v38 = vadd.f32 %v36, %v37
    %v39 = vsel %vm35, %v28, 0.0
    %v40 = vadd.f32 %v38, %v39
    %v41 = vsel %vm35, %v32, 0.0
    %v42 = vadd.f32 %v40, %v41
    %43 = vadd.xlane.f32.xlu0 %v42
    %v44 = vpop.xlane.xlu0 %43
    %v45 = vmul.f32 %v44, 0.001953125
    %v48 = vunpack.c.l.s4 839922192
    %v49 = vunpack.c.0.s8 %v48
    %v50 = vlaneseq
    %v51 = vshrl.u32 %v50, 7
    %v52 = vsub.s32 %v49, %v51
    %v53 = vrot.slane %v45, %v52
    %v55 = vsub.f32 %v27, %v53
    %v56 = vsub.f32 %v28, %v53
    %v57 = vmul.f32 %v55, %v55
    %v58 = vmul.f32 %v56, %v56
    %v61 = vcombine.high %v57, %v57
    %v62 = vcombine.high %v58, %v58
    %v65 = vsel %vm35, %v57, 0.0
    %v66 = vsel %vm35, %v61, 0.0
    %v67 = vadd.f32 %v65, %v66
    %v68 = vsel %vm35, %v58, 0.0
    %v69 = vadd.f32 %v67, %v68
    %v70 = vsel %vm35, %v62, 0.0
    %v71 = vadd.f32 %v69, %v70
    %72 = vadd.xlane.f32.xlu0 %v71
    %v73 = vpop.xlane.xlu0 %72
    %v74 = vmul.f32 %v73, 0.001953125
    %v75 = vadd.f32 %v74, 1e-05
    %v76 = vrsqrt.pop %v75
    %v77 = vld [vmem:[%s1] sm:$0xf]
    %v78 = vld [vmem:[%s2] sm:$0xf]
    %v79 = vmul.f32 %v77, %v76
    %81 = vset.pattern.permute.xlu0 0
    %82 = vperm.xlu0 %81, %v79
    %v83 = vpop.permute.xlu0 %82
    %v85 = vunpack.c.l.s4 839922192
    %v86 = vunpack.c.0.s8 %v85
    %v87 = vlaneseq
    %v88 = vshrl.u32 %v87, 7
    %v89 = vsub.s32 %v86, %v88
    %v90 = vrot.slane %v83, %v89
    %v92 = vmul.f32 %v55, %v90
    %94 = vset.pattern.permute.xlu0 0
    %95 = vperm.xlu0 %94, %v78
    %v96 = vpop.permute.xlu0 %95
    %v98 = vunpack.c.l.s4 839922192
    %v99 = vunpack.c.0.s8 %v98
    %v100 = vlaneseq
    %v101 = vshrl.u32 %v100, 7
    %v102 = vsub.s32 %v99, %v101
    %v103 = vrot.slane %v96, %v102
    %v105 = vadd.f32 %v92, %v103
    %106 = vst [vmem:[#allocation5] sm:$0xff] %v105
    %107 = vset.pattern.permute.xlu0 1
    %108 = vperm.xlu0 %107, %v79
    %v109 = vpop.permute.xlu0 %108
    %v111 = vunpack.c.l.s4 839922192
    %v112 = vunpack.c.0.s8 %v111
    %v113 = vlaneseq
    %v114 = vshrl.u32 %v113, 7
    %v115 = vsub.s32 %v112, %v114
    %v116 = vrot.slane %v109, %v115
    %v118 = vmul.f32 %v56, %v116
    %119 = vset.pattern.permute.xlu0 1
    %120 = vperm.xlu0 %119, %v78
    %v121 = vpop.permute.xlu0 %120
    %v123 = vunpack.c.l.s4 839922192
    %v124 = vunpack.c.0.s8 %v123
    %v125 = vlaneseq
    %v126 = vshrl.u32 %v125, 7
    %v127 = vsub.s32 %v124, %v126
    %v128 = vrot.slane %v121, %v127
    %v130 = vadd.f32 %v118, %v128
    %131 = vst [vmem:[#allocation5 + $0x8] sm:$0xff] %v130
    // Predicated region
    $region18: #{tpu_custom_call.1} parent=1 // pred_check
      _
    $region19: #{tpu_custom_call.1} parent=1 // pred_check_branch
      %133 = sbr.rel (0) target = $region21
    $region20: #{tpu_custom_call.1} parent=1 // pred_region
      %s135 = ssub.s32 256, 256
      %136 = vsyncadd [#allocation4], %s135
      %s138 = sshll.u32 [#allocation5], 4
      %s139 = int_to_ptr.vmem [resolvable:$true] %s138
      %141 = dma.vmem_to_hbm [thread:$0]  %s139, 256, %s3, [#allocation4]
    $region21: #{tpu_custom_call.1} parent=1 // pred_fallthru
      _
    // Predicated region
    $region22: #{tpu_custom_call.1} parent=1 // pred_check
      _
    $region23: #{tpu_custom_call.1} parent=1 // pred_check_branch
      %143 = sbr.rel (0) target = $region25
    $region24: #{tpu_custom_call.1} parent=1 // pred_region
      %144 = dma.done [#allocation4], 256
    $region25: #{tpu_custom_call.1} parent=1 // pred_fallthru
      _
    %145 = vsyncpa [#allocation3], 1
    %146 = vsyncpa [#allocation4], 1

</llo_original>
